<compile_context>
chip_gen: v6e
topology: v6e:2x2x1
jax: 0.10.0
libtpu: 0.0.40
codegen_flags: <defaults>
</compile_context>

<pallas_src>
import functools

import numpy as np

import jax
import jax.numpy as jnp
from jax.experimental import pallas as pl
from jax.experimental.pallas import tpu as pltpu

REN_CH = [8, 8, 16, 128]  # present in the PyTorch module; range branch unused in forward()

# ------------------------------------------------------------------ chip-aware limits
try:
    _VMEM_CAP = int(pltpu.get_tpu_info().vmem_capacity_bytes)
except Exception:  # pragma: no cover - conservative fallback
    _VMEM_CAP = 128 * 1024 * 1024
_VMEM_LIMIT_BYTES = min(_VMEM_CAP // 2, 64 * 1024 * 1024)
# v7x-class chips (64 MiB VMEM) get a smaller lane tile; v5e/v6e (128 MiB) go bigger.
_PIXEL_TILE_CAP = 4096 if _VMEM_CAP <= 64 * 1024 * 1024 else 8192

_TAP_OFFSETS = tuple((dy, dx) for dy in (-1, 0, 1) for dx in (-1, 0, 1))


def _compiler_params(n_grid_axes):
    # All grid axes are independent -> parallel (v7x shards across its 2 TCs).
    return pltpu.CompilerParams(
        dimension_semantics=("parallel",) * n_grid_axes,
        vmem_limit_bytes=_VMEM_LIMIT_BYTES,
    )


def _pick_pixel_tile(p):
    """Lane-dense pixel tile: multiple of 128, capped for VMEM, full dim if tiny."""
    if p < 128:
        return p
    t = min(_PIXEL_TILE_CAP, (p // 128) * 128)
    while t >= 128:
        if p % t == 0:
            return t
        t -= 128
    # No 128-multiple divisor: capped tile with a partial last block (safe for the
    # 1x1 matmul: every output pixel depends only on its own column).
    return min(_PIXEL_TILE_CAP, p)


@functools.lru_cache(maxsize=None)
def _tap_masks(H, W):
    """(9, H*W) {0,1} masks: mask[t, p]==1 iff tap t of pixel p stays inside the image."""
    rows = np.arange(H)
    cols = np.arange(W)
    masks = []
    for dy, dx in _TAP_OFFSETS:
        mr = ((rows + dy >= 0) & (rows + dy < H)).astype(np.float32)  # (H,)
        mc = ((cols + dx >= 0) & (cols + dx < W)).astype(np.float32)  # (W,)
        masks.append(np.outer(mr, mc).reshape(H * W))
    return jnp.asarray(np.stack(masks))  # (9, P) f32


# ----------------------------------------------------------------------------- kernels
def _conv1x1_kernel(x_ref, w_ref, b_ref, o_ref):
    # x: (1, Cin, TP)  w: (Cout, Cin)  b: (Cout, 128)  o: (1, Cout, TP)   [TP lane-dense]
    o_ref[0] = (
        jnp.dot(w_ref[...], x_ref[0], preferred_element_type=jnp.float32) + b_ref[:, :1]
    ).astype(o_ref.dtype)


def _conv1x1_add_kernel(x_ref, skip_ref, w_ref, b_ref, o_ref):
    # Same as above but with the pyramid merge add fused into the epilogue.
    o_ref[0] = (
        jnp.dot(w_ref[...], x_ref[0], preferred_element_type=jnp.float32)
        + b_ref[:, :1]
        + skip_ref[0]
    ).astype(o_ref.dtype)


def _conv3x3_fused_kernel(a_ref, b_ref, w_ref, bias_ref, mask_ref, o_ref, *, W):
    # a/b: (1, C, P) UNPADDED flat views of the two pyramid operands.
    # w:   (9, Cout, C) per-tap weights, bias: (Cout, 128), mask: (9, P), o: (1, Cout, P).
    # out = conv3x3(a + b), stride 1, zero padding 1 -- padding handled by masking the
    # wrapped pltpu.roll reads, so no padded HBM tensors, no crop, no im2col scratch.
    cout = o_ref.shape[1]
    p = o_ref.shape[2]
    s = a_ref[0] + b_ref[0]                                   # fused top + bottom add (C, P)
    acc = jnp.zeros((cout, p), jnp.float32)
    for t, (dy, dx) in enumerate(_TAP_OFFSETS):
        off = dy * W + dx                                     # flat-index tap offset (static)
        shifted = s if off == 0 else pltpu.roll(s, shift=(-off) % p, axis=1)
        tap = shifted * mask_ref[t:t + 1, :]                  # zero out wrap / border reads
        acc = acc + jnp.dot(w_ref[t], tap, preferred_element_type=jnp.float32)
    o_ref[0] = (acc + bias_ref[:, :1]).astype(o_ref.dtype)


# ----------------------------------------------------------------------------- wrappers
def conv1x1(x, w, b, skip=None):
    """1x1 conv as a channel matmul over a (C, pixels) view; optional fused add.

    x: (N, Cin, H, W), w: (Cout, Cin), b: (Cout, 128), skip: optional (N, Cout, H, W).
    """
    N, Cin, H, W = x.shape
    Cout = w.shape[0]
    P = H * W
    x3 = x.reshape(N, Cin, P)                  # contiguous -> free
    tp = _pick_pixel_tile(P)
    grid = (N, pl.cdiv(P, tp))

    x_spec = pl.BlockSpec((1, Cin, tp), lambda n, j: (n, 0, j))
    w_spec = pl.BlockSpec((Cout, Cin), lambda n, j: (0, 0))
    b_spec = pl.BlockSpec((Cout, 128), lambda n, j: (0, 0))
    o_spec = pl.BlockSpec((1, Cout, tp), lambda n, j: (n, 0, j))
    out_shape = jax.ShapeDtypeStruct((N, Cout, P), x.dtype)

    if skip is None:
        out = pl.pallas_call(
            _conv1x1_kernel,
            out_shape=out_shape,
            grid=grid,
            in_specs=[x_spec, w_spec, b_spec],
            out_specs=o_spec,
            compiler_params=_compiler_params(2),
        )(x3, w, b)
    else:
        s_spec = pl.BlockSpec((1, Cout, tp), lambda n, j: (n, 0, j))
        out = pl.pallas_call(
            _conv1x1_add_kernel,
            out_shape=out_shape,
            grid=grid,
            in_specs=[x_spec, s_spec, w_spec, b_spec],
            out_specs=o_spec,
            compiler_params=_compiler_params(2),
        )(x3, skip.reshape(N, Cout, P), w, b)
    return out.reshape(N, Cout, H, W)


def conv3x3_fused_add(a, b, w9, bias):
    """out = conv3x3(a + b), stride 1, padding 1; merge add fused, taps built in-kernel.

    a, b: (N, C, H, W); w9: (9, Cout, C) with t = (dy+1)*3 + (dx+1); bias: (Cout, 128).
    """
    N, C, H, W = a.shape
    Cout = w9.shape[1]
    P = H * W
    mask9 = _tap_masks(H, W)

    kernel = functools.partial(_conv3x3_fused_kernel, W=W)
    out = pl.pallas_call(
        kernel,
        out_shape=jax.ShapeDtypeStruct((N, Cout, P), a.dtype),
        grid=(N,),
        in_specs=[
            pl.BlockSpec((1, C, P), lambda n: (n, 0, 0)),
            pl.BlockSpec((1, C, P), lambda n: (n, 0, 0)),
            pl.BlockSpec((9, Cout, C), lambda n: (0, 0, 0)),
            pl.BlockSpec((Cout, 128), lambda n: (0, 0)),
            pl.BlockSpec((9, P), lambda n: (0, 0)),
        ],
        out_specs=pl.BlockSpec((1, Cout, P), lambda n: (n, 0, 0)),
        compiler_params=_compiler_params(1),
    )(a.reshape(N, C, P), b.reshape(N, C, P), w9, bias, mask9)
    return out.reshape(N, Cout, H, W)


def nearest_resize_nchw(x, out_hw):
    """F.interpolate(..., mode='nearest') semantics: src = floor(dst * in/out). NCHW glue."""
    N, C, H, W = x.shape
    oh, ow = int(out_hw[0]), int(out_hw[1])
    if (oh, ow) == (H, W):
        return x
    if oh % H == 0 and ow % W == 0:            # integer nearest upsample == repeat
        return jnp.repeat(jnp.repeat(x, oh // H, axis=2), ow // W, axis=3)
    if H % oh == 0 and W % ow == 0:            # integer nearest downsample == stride slice
        return x[:, :, ::H // oh, ::W // ow]
    hi = (jnp.arange(oh) * H) // oh
    wi = (jnp.arange(ow) * W) // ow
    return x[:, :, hi][:, :, :, wi]


# ----------------------------------------------------------------------------- module
def _xavier_uniform(key, shape, fan_in, fan_out):
    bound = (6.0 / (fan_in + fan_out)) ** 0.5
    return jax.random.uniform(key, shape, jnp.float32, -bound, bound)


def _bias(key, cout):
    # lane-dense (Cout, 128) pre-broadcast bias block (kernel reads column 0)
    return jnp.tile(jax.random.uniform(key, (cout, 1), jnp.float32, -0.1, 0.1), (1, 128))


class RangeAwareFPNPallas:
    """JAX/Pallas re-implementation of RangeAwareFPN.forward.

    lateral_convs_range / lateral_convs_prob and the `in_range` argument exist in the
    PyTorch module but are never used inside forward(), so no compute is emitted here.
    """

    def __init__(self, in_channels, out_channels, num_outs, start_level=0,
                 end_level=-1, add_extra_convs=False, key=None):
        assert isinstance(in_channels, list)
        self.in_channels = in_channels
        self.out_channels = out_channels
        self.num_ins = len(in_channels)
        self.num_outs = num_outs
        if end_level == -1:
            self.backbone_end_level = self.num_ins
            assert num_outs >= self.num_ins - start_level
        else:
            self.backbone_end_level = end_level
            assert end_level <= len(in_channels)
            assert num_outs == end_level - start_level
        self.start_level = start_level
        self.add_extra_convs = add_extra_convs
        if add_extra_convs:
            # TODO(synk): add_extra_convs=True branch (extra stride-2 3x3 convs) not implemented.
            raise NotImplementedError("add_extra_convs=True path not implemented")

        if key is None:
            key = jax.random.PRNGKey(0)
        L = self.backbone_end_level - self.start_level
        keys = jax.random.split(key, 6 * L)
        C = out_channels
        # Weights pre-packed ONCE at init into the kernel layouts:
        #   1x1: (Cout, Cin) matmul LHS; 3x3: (9, Cout, Cin) per-tap; bias: (Cout, 128)
        self.top_w, self.top_b = [], []
        self.bot_w, self.bot_b = [], []
        self.fpn_w, self.fpn_b = [], []
        for i in range(L):
            cin_top = in_channels[i + self.start_level]
            cin_bot = in_channels[self.backbone_end_level - 1 - i]
            k0, k1, k2, k3, k4, k5 = keys[6 * i:6 * i + 6]
            self.top_w.append(_xavier_uniform(k0, (C, cin_top), cin_top, C))
            self.top_b.append(_bias(k1, C))
            self.bot_w.append(_xavier_uniform(k2, (C, cin_bot), cin_bot, C))
            self.bot_b.append(_bias(k3, C))
            w_hwio = _xavier_uniform(k4, (3, 3, C, C), 9 * C, 9 * C)   # [ky, kx, ci, co]
            # pack to [t, co, ci] with t = ky*3 + kx to match the in-kernel tap order
            self.fpn_w.append(jnp.transpose(w_hwio, (0, 1, 3, 2)).reshape(9, C, C))
            self.fpn_b.append(_bias(k5, C))

    def __call__(self, inputs_nchw, in_range=None):
        assert len(inputs_nchw) == len(self.in_channels)
        xs = inputs_nchw                       # NCHW kept natively: pixels land in lanes
        L = self.backbone_end_level - self.start_level

        # top-down pathway: lateral 1x1 conv fused with (+ nearest-upsampled coarser level)
        lat_top = [None] * L
        lat_top[L - 1] = conv1x1(xs[self.start_level + L - 1],
                                 self.top_w[L - 1], self.top_b[L - 1])
        for i in range(L - 1, 0, -1):
            x_fine = xs[self.start_level + i - 1]
            skip = nearest_resize_nchw(lat_top[i], x_fine.shape[2:4])
            lat_top[i - 1] = conv1x1(x_fine, self.top_w[i - 1], self.top_b[i - 1], skip=skip)

        # bottom-up pathway: lateral 1x1 conv fused with (+ nearest-downsampled finer level)
        lat_bot = [None] * L
        lat_bot[L - 1] = conv1x1(xs[self.backbone_end_level - L],
                                 self.bot_w[L - 1], self.bot_b[L - 1])
        for i in range(L - 1, 0, -1):
            x_coarse = xs[self.backbone_end_level - 1 - (i - 1)]
            skip = nearest_resize_nchw(lat_bot[i], x_coarse.shape[2:4])
            lat_bot[i - 1] = conv1x1(x_coarse, self.bot_w[i - 1], self.bot_b[i - 1], skip=skip)

        # merged 3x3 fpn convs: the top + bottom add is fused into the conv kernel
        outs = [
            conv3x3_fused_add(lat_top[i], lat_bot[L - 1 - i], self.fpn_w[i], self.fpn_b[i])
            for i in range(L)
        ]

        if self.num_outs > len(outs):
            # add_extra_convs=False path: max_pool2d(kernel=1, stride=2) is a pure
            # stride-2 subsample -> indexing glue.
            for _ in range(self.num_outs - L):
                outs.append(outs[-1][:, :, ::2, ::2])
        return tuple(outs)


# ----------------------------------------------------------------------------- main
if __name__ == "__main__":
    key = jax.random.PRNGKey(0)
    in_channels = [4, 8, 16, 32]
    out_channels = 8
    num_outs = 5
    batch = 2
    spatial = [32, 16, 8, 4]

    k_in, k_mod, k_range = jax.random.split(key, 3)
    k_ins = jax.random.split(k_in, len(in_channels))
    inputs = [
        jax.random.normal(k_ins[i], (batch, in_channels[i], spatial[i], spatial[i]), jnp.float32)
        for i in range(len(in_channels))
    ]
    # in_range is accepted (as in the PyTorch forward) but unused by the reference code.
    k_rs = jax.random.split(k_range, len(in_channels))
    in_range = [
        jax.random.normal(k_rs[i], (batch, REN_CH[i], spatial[i], spatial[i]), jnp.float32)
        for i in range(len(in_channels))
    ]

    model = RangeAwareFPNPallas(in_channels, out_channels, num_outs, key=k_mod)
    outs = model(inputs, in_range)

    expected_spatial = spatial + [spatial[-1] // 2]
    assert len(outs) == num_outs
    for o, s in zip(outs, expected_spatial):
        assert o.shape == (batch, out_channels, s, s), o.shape
        jax.block_until_ready(o)

    print("KERNEL_OK")
</pallas_src>

<mosaic_0001>
module attributes {stable_mosaic.version = 11 : i64} {
  func.func @_conv1x1_kernel(%arg0: i32, %arg1: i32, %arg2: memref<1x32x16xf32, #tpu.memory_space<vmem>>, %arg3: memref<8x32xf32, #tpu.memory_space<vmem>>, %arg4: memref<8x128xf32, #tpu.memory_space<vmem>>, %arg5: memref<1x8x16xf32, #tpu.memory_space<vmem>>) attributes {dimension_semantics = [#tpu.dimension_semantics<parallel>, #tpu.dimension_semantics<parallel>], iteration_bounds = array<i64: 2, 1>, scalar_prefetch = 0 : i64, scratch_operands = 0 : i64, tpu.core_type = #tpu.core_type<tc>, window_params = [{transform_indices = @transform_0, window_bounds = array<i64: 1, 32, 16>}, {pipeline_mode = #tpu.pipeline_mode<synchronous>, transform_indices = @transform_1, window_bounds = array<i64: 8, 32>}, {pipeline_mode = #tpu.pipeline_mode<synchronous>, transform_indices = @transform_2, window_bounds = array<i64: 8, 128>}, {transform_indices = @transform_3, window_bounds = array<i64: 1, 8, 16>}]} {
    %c0 = arith.constant 0 : index
    %c0_0 = arith.constant 0 : index
    %0 = vector.load %arg3[%c0, %c0_0] : memref<8x32xf32, #tpu.memory_space<vmem>>, vector<8x32xf32>
    %c0_1 = arith.constant 0 : index
    %c0_2 = arith.constant 0 : index
    %c0_3 = arith.constant 0 : index
    %1 = vector.load %arg2[%c0_1, %c0_2, %c0_3] : memref<1x32x16xf32, #tpu.memory_space<vmem>>, vector<1x32x16xf32>
    %2 = vector.shape_cast %1 : vector<1x32x16xf32> to vector<32x16xf32>
    %cst = arith.constant dense<0.000000e+00> : vector<8x16xf32>
    %3 = tpu.matmul %0, %2, %cst {dimension_numbers = #tpu.dot_dimension_numbers<[1], [0], [0], [1], [0, 0, 1, 1], [], []>} : vector<8x32xf32>, vector<32x16xf32>, vector<8x16xf32> -> vector<8x16xf32>
    %c0_4 = arith.constant 0 : index
    %c0_5 = arith.constant 0 : index
    %4 = vector.load %arg4[%c0_4, %c0_5] : memref<8x128xf32, #tpu.memory_space<vmem>>, vector<8x1xf32>
    %5 = vector.broadcast %4 : vector<8x1xf32> to vector<8x16xf32>
    %6 = arith.addf %3, %5 : vector<8x16xf32>
    %c0_6 = arith.constant 0 : index
    %c0_7 = arith.constant 0 : index
    %c0_8 = arith.constant 0 : index
    %7 = vector.load %arg5[%c0_6, %c0_7, %c0_8] : memref<1x8x16xf32, #tpu.memory_space<vmem>>, vector<1x8x16xf32>
    %8 = vector.shape_cast %7 : vector<1x8x16xf32> to vector<8x16xf32>
    %9 = vector.shape_cast %6 : vector<8x16xf32> to vector<1x8x16xf32>
    tpu.vector_store %arg5[%c0_6, %c0_7, %c0_8], %9 {strides = array<i32>} : memref<1x8x16xf32, #tpu.memory_space<vmem>>, vector<1x8x16xf32>,
    return
  }
  func.func @transform_0(%arg0: i32, %arg1: i32) -> (i32, i32, i32) {
    %c0_i32 = arith.constant 0 : i32
    %c0_i32_0 = arith.constant 0 : i32
    return %arg0, %c0_i32, %arg1 : i32, i32, i32
  }
  func.func @transform_1(%arg0: i32, %arg1: i32) -> (i32, i32) {
    %c0_i32 = arith.constant 0 : i32
    %c0_i32_0 = arith.constant 0 : i32
    %c0_i32_1 = arith.constant 0 : i32
    return %c0_i32, %c0_i32_0 : i32, i32
  }
  func.func @transform_2(%arg0: i32, %arg1: i32) -> (i32, i32) {
    %c0_i32 = arith.constant 0 : i32
    %c0_i32_0 = arith.constant 0 : i32
    %c0_i32_1 = arith.constant 0 : i32
    return %c0_i32, %c0_i32_0 : i32, i32
  }
  func.func @transform_3(%arg0: i32, %arg1: i32) -> (i32, i32, i32) {
    %c0_i32 = arith.constant 0 : i32
    %c0_i32_0 = arith.constant 0 : i32
    return %arg0, %c0_i32, %arg1 : i32, i32, i32
  }
}

</mosaic_0001>

<llo_original>
// kernel: tpu_custom_call.1
$region0: #{tpu_custom_call.1}
  #allocation0 [shape = 'u32[]', space=smem, size = 0x4, offset = 0x4, fixed_abs, tag = 'smem constant byte address 0x4 - core index']
  #allocation1 [shape = 'u32[144,128]{1,0:T(1,128)}', space=vmem, size = 0x12000, scoped, tag = 'internal scratch']
  %s0 = inlined_call_operand.vmem [shape: f32[2,32,16], index: 0, kind: input, shape index: {}]
  %s1 = inlined_call_operand.vmem [shape: f32[8,32], index: 1, kind: input, shape index: {}]
  %s2 = inlined_call_operand.vmem [shape: f32[8,128], index: 2, kind: input, shape index: {}]
  %s3 = inlined_call_operand.hbm [shape: f32[2,8,16], index: 3, kind: output, shape index: {}]
  %s4 = sld [smem:[#allocation0]]
  $region45: #{tpu_custom_call.1} parent=0
    _
  %s6 = ssub.s32 1, %s4
  %s7 = scalar_select 0, %s6, %s4
  $region1: #{tpu_custom_call.1} parent=0
    #allocation2 [shape = 'u8[8192]{0}', space=vmem, size = 0x2000, scoped, tag = 'output window, operand 0']
    #allocation3 [shape = 's32[2]{0}', space=sflag, size = 0x8, scoped, tag = 'scoped memory for tpu_custom_call.1']
    %8 = vsyncpa [#allocation3], 0
    %s9 = scalar_lea.sflag [#allocation3], 1
    %10 = vsyncpa %s9, 0
    loop: start=0, step=1, limit=4
    $region2: #{tpu_custom_call.1} parent=1 // loop_pre_header
      _
    $region3: #{tpu_custom_call.1} parent=1 // loop_header
      %s12 = sphi 0, %s16
      %p13 = scmp.ge.s32.totalorder %s12, 4
      %s19 = sphi 0, %s31
      %s20 = sphi 0, %s27
      %s21 = sphi 0, %s19
      %s22 = sphi 0, %s20
      %s23 = sphi 0, %s21
      %s24 = sphi 0, %s22
      %s36 = sphi 0, %s38
      %s39 = sphi 0, %s36
      %s40 = sphi 0, %s39
      %s56 = sphi 0, %s40
      %s60 = sphi 0, %s60
      %s62 = sphi 0, %s60
      %s63 = sphi 0, %s62
      %s77 = sphi 0, %s63
      %s81 = sphi 0, %s81
      %s83 = sphi 0, %s81
      %s84 = sphi 0, %s83
      %s98 = sphi 0, %s84
      %s106 = sphi 0, %s108
      %s109 = sphi 0, %s106
      %s110 = sphi 0, %s109
      %s126 = sphi 0, %s110
    $region4: #{tpu_custom_call.1} parent=1 // loop_header_branch
      %15 = sbr.rel (%p13) target = $region8
    $region5: #{tpu_custom_call.1} parent=1 // loop_body
      %s17 = ssub.s32 %s12, 1
      %s18 = ssub.s32 %s12, 2
      %s25 = sadd.s32 1, %s20
      %p26 = scmp.ge.s32.totalorder %s25, 1
      %s27 = scalar_select %p26, 0, %s25
      %s28 = sadd.s32 1, %s19
      %s29 = scalar_select %p26, %s28, %s19
      %p30 = scmp.ge.s32.totalorder %s29, 2
      %s31 = scalar_select %p30, 0, %s29
      %s32 = ssub.s32 %s19, %s31
      %s33 = ssub.s32 %s20, %s27
      %s34 = sor.u32 %s32, %s33
      %p35 = scmp.eq.s32.totalorder %s34, 0
      %s37 = sadd.s32 %s36, 1
      %s38 = scalar_select %p35, %s36, %s37
      %p41 = pneg %p35
      %p42 = scmp.eq.s32.totalorder %s12, 1
      %p43 = por %p41, %p42
      %p44 = scmp.ne.s32.totalorder %s36, %s39
      %p45 = scmp.eq.s32.totalorder %s12, 0
      %p46 = por %p44, %p45
      %p47 = scmp.ne.s32.totalorder %s36, %s39
      %p48 = scmp.eq.s32.totalorder %s17, 1
      %p49 = por %p47, %p48
      %p50 = scmp.ne.s32.totalorder %s39, %s40
      %p51 = scmp.eq.s32.totalorder %s17, 0
      %p52 = por %p50, %p51
      %p53 = scmp.ne.s32.totalorder %s39, %s40
      %p54 = scmp.eq.s32.totalorder %s18, 1
      %p55 = por %p53, %p54
      %p57 = scmp.ne.s32.totalorder %s40, %s56
      %p58 = scmp.eq.s32.totalorder %s18, 0
      %p59 = por %p57, %p58
      %s61 = sadd.s32 %s60, 1
      %p64 = scmp.eq.s32.totalorder %s12, 1
      %p65 = scmp.ne.s32.totalorder %s60, %s62
      %p66 = scmp.eq.s32.totalorder %s12, 0
      %p67 = por %p65, %p66
      %p68 = scmp.ne.s32.totalorder %s60, %s62
      %p69 = scmp.eq.s32.totalorder %s17, 1
      %p70 = por %p68, %p69
      %p71 = scmp.ne.s32.totalorder %s62, %s63
      %p72 = scmp.eq.s32.totalorder %s17, 0
      %p73 = por %p71, %p72
      %p74 = scmp.ne.s32.totalorder %s62, %s63
      %p75 = scmp.eq.s32.totalorder %s18, 1
      %p76 = por %p74, %p75
      %p78 = scmp.ne.s32.totalorder %s63, %s77
      %p79 = scmp.eq.s32.totalorder %s18, 0
      %p80 = por %p78, %p79
      %s82 = sadd.s32 %s81, 1
      %p85 = scmp.eq.s32.totalorder %s12, 1
      %p86 = scmp.ne.s32.totalorder %s81, %s83
      %p87 = scmp.eq.s32.totalorder %s12, 0
      %p88 = por %p86, %p87
      %p89 = scmp.ne.s32.totalorder %s81, %s83
      %p90 = scmp.eq.s32.totalorder %s17, 1
      %p91 = por %p89, %p90
      %p92 = scmp.ne.s32.totalorder %s83, %s84
      %p93 = scmp.eq.s32.totalorder %s17, 0
      %p94 = por %p92, %p93
      %p95 = scmp.ne.s32.totalorder %s83, %s84
      %p96 = scmp.eq.s32.totalorder %s18, 1
      %p97 = por %p95, %p96
      %p99 = scmp.ne.s32.totalorder %s84, %s98
      %p100 = scmp.eq.s32.totalorder %s18, 0
      %p101 = por %p99, %p100
      %s102 = ssub.s32 %s19, %s31
      %s103 = ssub.s32 %s20, %s27
      %s104 = sor.u32 %s102, %s103
      %p105 = scmp.eq.s32.totalorder %s104, 0
      %s107 = sadd.s32 %s106, 1
      %s108 = scalar_select %p105, %s106, %s107
      %p111 = pneg %p105
      %p112 = scmp.eq.s32.totalorder %s12, 1
      %p113 = por %p111, %p112
      %p114 = scmp.ne.s32.totalorder %s106, %s109
      %p115 = scmp.eq.s32.totalorder %s12, 0
      %p116 = por %p114, %p115
      %p117 = scmp.ne.s32.totalorder %s106, %s109
      %p118 = scmp.eq.s32.totalorder %s17, 1
      %p119 = por %p117, %p118
      %p120 = scmp.ne.s32.totalorder %s109, %s110
      %p121 = scmp.eq.s32.totalorder %s17, 0
      %p122 = por %p120, %p121
      %p123 = scmp.ne.s32.totalorder %s109, %s110
      %p124 = scmp.eq.s32.totalorder %s18, 1
      %p125 = por %p123, %p124
      %p127 = scmp.ne.s32.totalorder %s110, %s126
      %p128 = scmp.eq.s32.totalorder %s18, 0
      %p129 = por %p127, %p128
      %p130 = scmp.le.s32.totalorder 1, %s12
      %p131 = scmp.lt.s32.totalorder %s12, 3
      %p132 = pnand %p130, %p131
      %p133 = pneg %p132
      // Predicated region
      $region9: #{tpu_custom_call.1} parent=5 // pred_check
        _
      $region10: #{tpu_custom_call.1} parent=5 // pred_check_branch
        %135 = sbr.rel (%p132) target = $region12
      $region11: #{tpu_custom_call.1} parent=5 // pred_region
        %s136 = ssub.s32 %s12, 1
        // Predicated region
        $region13: #{tpu_custom_call.1} parent=11 // pred_check
          %p137 = pneg %p73
        $region14: #{tpu_custom_call.1} parent=11 // pred_check_branch
          %139 = sbr.rel (%p137) target = $region16
        $region15: #{tpu_custom_call.1} parent=11 // pred_region
          _
        $region16: #{tpu_custom_call.1} parent=11 // pred_fallthru
          _
        // Predicated region
        $region17: #{tpu_custom_call.1} parent=11 // pred_check
          %p140 = pneg %p94
        $region18: #{tpu_custom_call.1} parent=11 // pred_check_branch
          %142 = sbr.rel (%p140) target = $region20
        $region19: #{tpu_custom_call.1} parent=11 // pred_region
          _
        $region20: #{tpu_custom_call.1} parent=11 // pred_fallthru
          _
      $region12: #{tpu_custom_call.1} parent=5 // pred_fallthru
        _
      %p143 = scmp.lt.s32.totalorder %s12, 2
      // Predicated region
      $region21: #{tpu_custom_call.1} parent=5 // pred_check
        %p144 = pneg %p143
      $region22: #{tpu_custom_call.1} parent=5 // pred_check_branch
        %146 = sbr.rel (%p144) target = $region24
      $region23: #{tpu_custom_call.1} parent=5 // pred_region
        // Predicated region
        $region25: #{tpu_custom_call.1} parent=23 // pred_check
          %p147 = pneg %p46
        $region26: #{tpu_custom_call.1} parent=23 // pred_check_branch
          %149 = sbr.rel (%p147) target = $region28
        $region27: #{tpu_custom_call.1} parent=23 // pred_region
          %p150 = scmp.lt.s32.totalorder %s19, 1
          %s151 = scalar_select %p150, %s19, 1
          %p152 = scmp.lt.s32.totalorder %s20, 0
          %s153 = scalar_select %p152, %s20, 0
          %s154 = smul.addr %s151, 4
          %s155 = sadd.s32 %s153, %s154
          %s156 = smul.addr %s155, 8
          %s157 = scalar_lea.vmem %s0, %s156
        $region28: #{tpu_custom_call.1} parent=23 // pred_fallthru
          _
      $region24: #{tpu_custom_call.1} parent=5 // pred_fallthru
        _
      %p158 = scmp.le.s32.totalorder 1, %s12
      %p159 = scmp.lt.s32.totalorder %s12, 3
      %p160 = pnand %p158, %p159
      %p161 = pneg %p160
      // Predicated region
      $region29: #{tpu_custom_call.1} parent=5 // pred_check
        _
      $region30: #{tpu_custom_call.1} parent=5 // pred_check_branch
        %163 = sbr.rel (%p160) target = $region32
      $region31: #{tpu_custom_call.1} parent=5 // pred_region
        %s164 = ssub.s32 %s12, 1
        %p165 = scmp.lt.s32.totalorder %s21, 1
        %s166 = scalar_select %p165, %s21, 1
        %p167 = scmp.lt.s32.totalorder %s22, 0
        %s168 = scalar_select %p167, %s22, 0
        %s169 = smul.addr %s166, 4
        %s170 = sadd.s32 %s168, %s169
        %s171 = smul.addr %s170, 8
        %s172 = scalar_lea.vmem %s0, %s171
        %p173 = pneg %p52
        %p174 = pneg %p49
        %p175 = pneg %p73
        %p176 = pneg %p70
        %p177 = pneg %p94
        %p178 = pneg %p91
        %p179 = pneg %p122
        %p180 = pneg %p119
        %s181 = sand.u32 %s109, 1
        %s182 = scalar_lea.sflag [#allocation3], %s181
        %s183 = sand.u32 %s109, 1
        %s184 = smul.addr %s183, 8
        %s185 = scalar_lea.vmem [#allocation2], %s184
        %p186 = scmp.lt.s32.totalorder %s21, 1
        %s187 = scalar_select %p186, %s21, 1
        %p188 = scmp.lt.s32.totalorder %s22, 0
        %s189 = scalar_select %p188, %s22, 0
        %s190 = smul.addr %s187, 4
        %s191 = sadd.s32 %s189, %s190
        %s192 = smul.addr %s191, 8
        %s193 = scalar_lea.vmem %s0, %s192
        %v194 = vld [vmem:[%s1] sm:$0xff]
        %v195 = vld [vmem:[%s193] sm:$0xff]
        %v196 = vld [vmem:[%s193 + $0x8] sm:$0xff]
        %v197 = vld [vmem:[%s193 + $0x10] sm:$0xff]
        %v198 = vld [vmem:[%s193 + $0x18] sm:$0xff]
        %v199 = vld [vmem:[%s2] sm:$0xff]
        %201 = vset.pattern.permute.xlu0 0
        %202 = vperm.xlu0 %201, %v199
        %v203 = vpop.permute.xlu0 %202
        %vm205 = vcmask 261120
        %v207 = vsel %vm205, %v194, 0
        %209 = vmatprep.subr.mxu0 0.0
        %210 = vmatpush1.msra.mxu0 0.0
        %211 = vmatprep.subr.mxu0 0.0
        %212 = vmatpush1.msra.mxu0 0.0
        %213 = vmatprep.subr.mxu0 0.0
        %214 = vmatpush1.msra.mxu0 0.0
        %215 = vmatprep.subr.mxu0 0.0
        %216 = vmatpush1.msra.mxu0 0.0
        %217 = vmatprep.subr.mxu0 0.0
        %218 = vmatpush1.msra.mxu0 0.0
        %219 = vmatprep.subr.mxu0 0.0
        %220 = vmatpush1.msra.mxu0 0.0
        %221 = vmatprep.subr.mxu0 0.0
        %222 = vmatpush1.msra.mxu0 0.0
        %223 = vmatprep.subr.mxu0 0.0
        %224 = vmatpush1.msra.mxu0 0.0
        %225 = vmatprep.subr.mxu0 0.0
        %226 = vmatpush1.msra.mxu0 0.0
        %227 = vmatprep.subr.mxu0 0.0
        %228 = vmatpush1.msra.mxu0 0.0
        %229 = vmatprep.subr.mxu0 0.0
        %230 = vmatpush1.msra.mxu0 0.0
        %231 = vmatprep.subr.mxu0 0.0
        %232 = vmatpush1.msra.mxu0 0.0
        %233 = vmatprep.subr.mxu0 0.0
        %234 = vmatpush1.msra.mxu0 %v198
        %235 = vmatprep.subr.mxu0 0.0
        %236 = vmatpush1.msra.mxu0 %v197
        %237 = vmatprep.subr.mxu0 0.0
        %238 = vmatpush1.msra.mxu0 %v196
        %239 = vmatprep.subr.mxu0 0.0
        %240 = vmatpush1.msra.mxu0 %v195
        %241 = vmatprep.subr.mxu0 0.0
        %242 = vmatpush2.msra.mxu0 0.0
        %243 = vmatprep.subr.mxu0 0.0
        %244 = vmatpush2.msra.mxu0 0.0
        %245 = vmatprep.subr.mxu0 0.0
        %246 = vmatpush2.msra.mxu0 0.0
        %247 = vmatprep.subr.mxu0 0.0
        %248 = vmatpush2.msra.mxu0 0.0
        %249 = vmatprep.subr.mxu0 0.0
        %250 = vmatpush2.msra.mxu0 0.0
        %251 = vmatprep.subr.mxu0 0.0
        %252 = vmatpush2.msra.mxu0 0.0
        %253 = vmatprep.subr.mxu0 0.0
        %254 = vmatpush2.msra.mxu0 0.0
        %255 = vmatprep.subr.mxu0 0.0
        %256 = vmatpush2.msra.mxu0 0.0
        %257 = vmatprep.subr.mxu0 0.0
        %258 = vmatpush2.msra.mxu0 0.0
        %259 = vmatprep.subr.mxu0 0.0
        %260 = vmatpush2.msra.mxu0 0.0
        %261 = vmatprep.subr.mxu0 0.0
        %262 = vmatpush2.msra.mxu0 0.0
        %263 = vmatprep.subr.mxu0 0.0
        %264 = vmatpush2.msra.mxu0 0.0
        %265 = vmatprep.subr.mxu0 0.0
        %266 = vmatpush2.msra.mxu0 0.0
        %267 = vmatprep.subr.mxu0 0.0
        %268 = vmatpush2.msra.mxu0 0.0
        %269 = vmatprep.subr.mxu0 0.0
        %270 = vmatpush2.msra.mxu0 0.0
        %271 = vmatprep.subr.mxu0 0.0
        %272 = vmatpush2.msra.mxu0 0.0
        %273 = vmatprep.mubr.f32.mxu0 0.0
        %274 = vmatmul.mubr.f32.gmra.mxu0 %v207
        %v275 = vpop.f32.mrf.mxu0
        %v276 = vadd.f32 %v203, %v275
        %v277 = vpop.f32.mrf.mxu0
        %278 = vdwg.mxu0
        %vm279 = vcmask 130048
        %280 = vst.msk [vmem:[%s185] sm:$0xff] %vm279, %v276
        %s281 = sand.u32 %s109, 1
        %s282 = scalar_lea.sflag [#allocation3], %s281
        %s283 = sand.u32 %s109, 1
        %s284 = smul.addr %s283, 8
        %s285 = scalar_lea.vmem [#allocation2], %s284
        // Predicated region
        $region33: #{tpu_custom_call.1} parent=31 // pred_check
          %p286 = pneg %p119
        $region34: #{tpu_custom_call.1} parent=31 // pred_check_branch
          %288 = sbr.rel (%p286) target = $region36
        $region35: #{tpu_custom_call.1} parent=31 // pred_region
          %s290 = ssub.s32 128, 128
          %291 = vsyncadd %s282, %s290
          %s292 = sadd.s32 %s22, %s21
          %s293 = smul.addr %s292, 128
          %s294 = scalar_lea.hbm %s3, %s293
          %s296 = sshll.u32 %s285, 4
          %s297 = int_to_ptr.vmem [resolvable:$true] %s296
          %299 = dma.vmem_to_hbm [thread:$0]  %s297, 128, %s294, %s282
        $region36: #{tpu_custom_call.1} parent=31 // pred_fallthru
          _
      $region32: #{tpu_custom_call.1} parent=5 // pred_fallthru
        _
      %p300 = scmp.le.s32.totalorder 2, %s12
      // Predicated region
      $region37: #{tpu_custom_call.1} parent=5 // pred_check
        %p301 = pneg %p300
      $region38: #{tpu_custom_call.1} parent=5 // pred_check_branch
        %303 = sbr.rel (%p301) target = $region40
      $region39: #{tpu_custom_call.1} parent=5 // pred_region
        %s304 = ssub.s32 %s12, 2
        // Predicated region
        $region41: #{tpu_custom_call.1} parent=39 // pred_check
          %p305 = pneg %p125
        $region42: #{tpu_custom_call.1} parent=39 // pred_check_branch
          %307 = sbr.rel (%p305) target = $region44
        $region43: #{tpu_custom_call.1} parent=39 // pred_region
          %s308 = sand.u32 %s110, 1
          %s309 = scalar_lea.sflag [#allocation3], %s308
          %s310 = sand.u32 %s110, 1
          %s311 = smul.addr %s310, 8
          %s312 = scalar_lea.vmem [#allocation2], %s311
          %313 = dma.done %s309, 128
        $region44: #{tpu_custom_call.1} parent=39 // pred_fallthru
          _
      $region40: #{tpu_custom_call.1} parent=5 // pred_fallthru
        _
    $region6: #{tpu_custom_call.1} parent=1 // loop_footer
      %s16 = sadd.s32 1, %s12
    $region7: #{tpu_custom_call.1} parent=1 // loop_footer_branch
      %11 = sbr.rel target = $region3
    $region8: #{tpu_custom_call.1} parent=1 // loop_exit
      _
    %314 = vsyncpa [#allocation3], 1
    %s315 = scalar_lea.sflag [#allocation3], 1
    %316 = vsyncpa %s315, 1

</llo_original>
